<compile_context>
chip_gen: v7x
topology: tpu7x:2x2x1
jax: 0.10.0
libtpu: 0.0.40
codegen_flags: <defaults>
</compile_context>

<pallas_src>
import functools

import jax
import jax.numpy as jnp
from jax.experimental import pallas as pl
from jax.experimental.pallas import tpu as pltpu


def _label_smoothing_kernel(x_ref, tgt_ref, out_ref, *, confidence, smoothing,
                            n_valid, tile_n):
    """One batch tile: fused log_softmax + smoothed NLL, accumulated into out_ref."""
    i = pl.program_id(0)

    # Zero the resident accumulator on the first grid step.
    @pl.when(i == 0)
    def _init():
        out_ref[...] = jnp.zeros_like(out_ref)

    x = x_ref[...].astype(jnp.float32)          # (TILE_N, C) upcast per-tile in VMEM
    tgt = tgt_ref[...]                          # (TILE_N, 1) int32
    c = x.shape[-1]

    # Numerically stable log_softmax along the lane (class) axis.
    m = jnp.max(x, axis=-1, keepdims=True)                        # (TILE_N, 1)
    shifted = x - m
    lse = jnp.log(jnp.sum(jnp.exp(shifted), axis=-1, keepdims=True))
    logprobs = shifted - lse                                      # (TILE_N, C)

    # Fused weighted reduction:
    #   confidence * nll + smoothing * smooth == -sum_c(w * logprobs)
    #   with w = confidence * onehot + smoothing / C
    col = jax.lax.broadcasted_iota(jnp.int32, x.shape, 1)         # (TILE_N, C)
    uniform = jnp.float32(smoothing / c)
    w = jnp.where(col == tgt, jnp.float32(confidence) + uniform, uniform)
    loss_col = -jnp.sum(w * logprobs, axis=-1, keepdims=True)     # (TILE_N, 1)

    # Mask rows that are batch padding (last tile when N % TILE_N != 0).
    row = i * tile_n + jax.lax.broadcasted_iota(jnp.int32, (tile_n, 1), 0)
    loss_col = jnp.where(row < n_valid, loss_col, jnp.float32(0.0))

    # Running SUM (single sublane reduce into the (1,1) resident accumulator).
    out_ref[...] += jnp.sum(loss_col, axis=0, keepdims=True)

    # Single divide by the true batch size on the last grid step.
    @pl.when(i == pl.num_programs(0) - 1)
    def _finalize():
        out_ref[...] = out_ref[...] * jnp.float32(1.0 / n_valid)


def label_smoothing_loss(x, target, smoothing=0.1, tile_n=None):
    """x: (N, C) float, target: (N,) int. Returns scalar f32 mean smoothed-NLL loss."""
    n, c = x.shape
    itemsize = jnp.dtype(x.dtype).itemsize

    # VMEM-aware tile sizing: keep one logits tile <= ~8 MiB so the double-buffered
    # stream plus in-kernel f32 temporaries fits comfortably even on v7x (64 MiB VMEM).
    n8 = pl.cdiv(n, 8) * 8
    if tile_n is None:
        budget = 8 * 1024 * 1024
        tile_n = max(8, min(512, (budget // max(1, c * itemsize)) // 8 * 8))
    tile_n = max(8, min(int(tile_n), n8))

    # Pad batch to a multiple of the tile (padded rows are masked inside the kernel).
    n_pad = pl.cdiv(n, tile_n) * tile_n
    if n_pad != n:
        x = jnp.pad(x, ((0, n_pad - n), (0, 0)))
        target = jnp.pad(target, (0, n_pad - n))
    tgt2d = target.reshape(n_pad, 1).astype(jnp.int32)
    num_tiles = n_pad // tile_n

    # Raise the scoped-VMEM limit above v5e's 16 MiB default; stays <= v7x physical.
    block_bytes = tile_n * c * itemsize + tile_n * 4
    vmem_limit = int(min(64 * 1024 * 1024,
                         max(32 * 1024 * 1024, 6 * block_bytes)))

    kernel = functools.partial(
        _label_smoothing_kernel,
        confidence=1.0 - smoothing,
        smoothing=smoothing,
        n_valid=n,
        tile_n=tile_n,
    )

    out = pl.pallas_call(
        kernel,
        out_shape=jax.ShapeDtypeStruct((1, 1), jnp.float32),
        grid=(num_tiles,),
        in_specs=[
            pl.BlockSpec((tile_n, c), lambda i: (i, 0)),   # logits stream (VMEM)
            pl.BlockSpec((tile_n, 1), lambda i: (i, 0)),   # targets (tiny VMEM block)
        ],
        out_specs=pl.BlockSpec((1, 1), lambda i: (0, 0)),  # resident accumulator
        compiler_params=pltpu.CompilerParams(
            dimension_semantics=("arbitrary",),            # reduction over batch tiles
            vmem_limit_bytes=vmem_limit,
        ),
    )(x, tgt2d)
    return out[0, 0]


def _reference_loss(x, target, smoothing=0.1):
    # Pure-JAX reference mirroring the PyTorch forward.
    logprobs = jax.nn.log_softmax(x.astype(jnp.float32), axis=-1)
    nll = -jnp.take_along_axis(logprobs, target[:, None], axis=-1)[:, 0]
    smooth = -jnp.mean(logprobs, axis=-1)
    loss = (1.0 - smoothing) * nll + smoothing * smooth
    return jnp.mean(loss)


if __name__ == "__main__":
    key = jax.random.PRNGKey(0)
    kx, kt = jax.random.split(key)
    N, C = 20, 96                     # small; N not a multiple of the tile -> masking path
    smoothing = 0.1

    x = jax.random.normal(kx, (N, C), dtype=jnp.float32)
    target = jax.random.randint(kt, (N,), 0, C, dtype=jnp.int32)

    # Multi-tile path (tile_n=8 -> 3 grid steps, last tile partially masked).
    out = label_smoothing_loss(x, target, smoothing=smoothing, tile_n=8)
    out = jax.block_until_ready(out)
    ref = _reference_loss(x, target, smoothing=smoothing)
    assert jnp.allclose(out, ref, rtol=1e-5, atol=1e-5), (out, ref)

    # Also exercise smoothing=0.0 (pure NLL) with default tile sizing.
    out0 = label_smoothing_loss(x, target, smoothing=0.0)
    out0 = jax.block_until_ready(out0)
    ref0 = _reference_loss(x, target, smoothing=0.0)
    assert jnp.allclose(out0, ref0, rtol=1e-5, atol=1e-5), (out0, ref0)

    print("KERNEL_OK")
</pallas_src>

<mosaic_0001>
module attributes {stable_mosaic.version = 11 : i64} {
  func.func @_label_smoothing_kernel(%arg0: i32, %arg1: memref<8x96xf32, #tpu.memory_space<vmem>>, %arg2: memref<8x1xi32, #tpu.memory_space<vmem>>, %arg3: memref<1x1xf32, #tpu.memory_space<vmem>>) attributes {dimension_semantics = [#tpu.dimension_semantics<arbitrary>], iteration_bounds = array<i64: 3>, scalar_prefetch = 0 : i64, scratch_operands = 0 : i64, tpu.core_type = #tpu.core_type<tc>, window_params = [{transform_indices = @transform_0, window_bounds = array<i64: 8, 96>}, {transform_indices = @transform_1, window_bounds = array<i64: 8, 1>}, {pipeline_mode = #tpu.pipeline_mode<synchronous>, transform_indices = @transform_2, window_bounds = array<i64: 1, 1>}]} {
    %c0_i32 = arith.constant 0 : i32
    %0 = arith.cmpi eq, %arg0, %c0_i32 : i32
    %1 = arith.extui %0 : i1 to i32
    %c0_i32_0 = arith.constant 0 : i32
    %2 = arith.cmpi ne, %1, %c0_i32_0 : i32
    scf.if %2 {
      %cst_17 = arith.constant 0.000000e+00 : f32
      %43 = vector.broadcast %cst_17 : f32 to vector<1x1xf32>
      %c0_18 = arith.constant 0 : index
      %c0_19 = arith.constant 0 : index
      %44 = vector.load %arg3[%c0_18, %c0_19] : memref<1x1xf32, #tpu.memory_space<vmem>>, vector<1x1xf32>
      tpu.vector_store %arg3[%c0_18, %c0_19], %43 {strides = array<i32>} : memref<1x1xf32, #tpu.memory_space<vmem>>, vector<1x1xf32>,
    } else {
    }
    %c0 = arith.constant 0 : index
    %c0_1 = arith.constant 0 : index
    %3 = vector.load %arg1[%c0, %c0_1] : memref<8x96xf32, #tpu.memory_space<vmem>>, vector<8x96xf32>
    %c0_2 = arith.constant 0 : index
    %c0_3 = arith.constant 0 : index
    %4 = vector.load %arg2[%c0_2, %c0_3] : memref<8x1xi32, #tpu.memory_space<vmem>>, vector<8x1xi32>
    %cst = arith.constant dense<0xFF800000> : vector<8xf32>
    %5 = vector.multi_reduction <maximumf>, %3, %cst [1] : vector<8x96xf32> to vector<8xf32>
    %6 = vector.shape_cast %5 : vector<8xf32> to vector<8x1xf32>
    %7 = vector.broadcast %6 : vector<8x1xf32> to vector<8x96xf32>
    %8 = arith.subf %3, %7 : vector<8x96xf32>
    %9 = math.exp %8 : vector<8x96xf32>
    %cst_4 = arith.constant dense<0.000000e+00> : vector<8xf32>
    %10 = vector.multi_reduction <add>, %9, %cst_4 [1] : vector<8x96xf32> to vector<8xf32>
    %11 = vector.shape_cast %10 : vector<8xf32> to vector<8x1xf32>
    %12 = math.log %11 : vector<8x1xf32>
    %13 = vector.broadcast %12 : vector<8x1xf32> to vector<8x96xf32>
    %14 = arith.subf %8, %13 : vector<8x96xf32>
    %15 = tpu.iota {dimensions = array<i32: 1>} : vector<8x96xi32>
    %16 = vector.broadcast %4 : vector<8x1xi32> to vector<8x96xi32>
    %17 = arith.cmpi eq, %15, %16 : vector<8x96xi32>
    %cst_5 = arith.constant 0.899999976 : f32
    %cst_6 = arith.constant 0.00104166672 : f32
    %18 = arith.addf %cst_5, %cst_6 : f32
    %cst_7 = arith.constant 0.00104166672 : f32
    %19 = vector.broadcast %18 : f32 to vector<8x96xf32>
    %20 = vector.broadcast %cst_7 : f32 to vector<8x96xf32>
    %21 = arith.select %17, %19, %20 : vector<8x96xi1>, vector<8x96xf32>
    %22 = arith.mulf %21, %14 : vector<8x96xf32>
    %cst_8 = arith.constant dense<0.000000e+00> : vector<8xf32>
    %23 = vector.multi_reduction <add>, %22, %cst_8 [1] : vector<8x96xf32> to vector<8xf32>
    %24 = vector.shape_cast %23 : vector<8xf32> to vector<8x1xf32>
    %cst_9 = arith.constant 0.000000e+00 : f32
    %25 = vector.broadcast %cst_9 : f32 to vector<8x1xf32>
    %26 = arith.subf %25, %24 : vector<8x1xf32>
    %c8_i32 = arith.constant 8 : i32
    %27 = arith.muli %arg0, %c8_i32 : i32
    %28 = tpu.iota {dimensions = array<i32: 0>} : vector<8x1xi32>
    %29 = vector.broadcast %27 : i32 to vector<8x1xi32>
    %30 = arith.addi %29, %28 : vector<8x1xi32>
    %c20_i32 = arith.constant 20 : i32
    %31 = vector.broadcast %c20_i32 : i32 to vector<8x1xi32>
    %32 = arith.cmpi slt, %30, %31 : vector<8x1xi32>
    %cst_10 = arith.constant 0.000000e+00 : f32
    %33 = vector.broadcast %cst_10 : f32 to vector<8x1xf32>
    %34 = arith.select %32, %26, %33 : vector<8x1xi1>, vector<8x1xf32>
    %c0_11 = arith.constant 0 : index
    %c0_12 = arith.constant 0 : index
    %35 = vector.load %arg3[%c0_11, %c0_12] : memref<1x1xf32, #tpu.memory_space<vmem>>, vector<1x1xf32>
    %cst_13 = arith.constant dense<0.000000e+00> : vector<1xf32>
    %36 = vector.multi_reduction <add>, %34, %cst_13 [0] : vector<8x1xf32> to vector<1xf32>
    %37 = vector.shape_cast %36 : vector<1xf32> to vector<1x1xf32>
    %38 = arith.addf %35, %37 : vector<1x1xf32>
    %c0_14 = arith.constant 0 : index
    %c0_15 = arith.constant 0 : index
    %39 = vector.load %arg3[%c0_14, %c0_15] : memref<1x1xf32, #tpu.memory_space<vmem>>, vector<1x1xf32>
    tpu.vector_store %arg3[%c0_14, %c0_15], %38 {strides = array<i32>} : memref<1x1xf32, #tpu.memory_space<vmem>>, vector<1x1xf32>,
    %c2_i32 = arith.constant 2 : i32
    %40 = arith.cmpi eq, %arg0, %c2_i32 : i32
    %41 = arith.extui %40 : i1 to i32
    %c0_i32_16 = arith.constant 0 : i32
    %42 = arith.cmpi ne, %41, %c0_i32_16 : i32
    scf.if %42 {
      %c0_17 = arith.constant 0 : index
      %c0_18 = arith.constant 0 : index
      %43 = vector.load %arg3[%c0_17, %c0_18] : memref<1x1xf32, #tpu.memory_space<vmem>>, vector<1x1xf32>
      %cst_19 = arith.constant 5.000000e-02 : f32
      %44 = vector.broadcast %cst_19 : f32 to vector<1x1xf32>
      %45 = arith.mulf %43, %44 : vector<1x1xf32>
      %c0_20 = arith.constant 0 : index
      %c0_21 = arith.constant 0 : index
      %46 = vector.load %arg3[%c0_20, %c0_21] : memref<1x1xf32, #tpu.memory_space<vmem>>, vector<1x1xf32>
      tpu.vector_store %arg3[%c0_20, %c0_21], %45 {strides = array<i32>} : memref<1x1xf32, #tpu.memory_space<vmem>>, vector<1x1xf32>,
    } else {
    }
    return
  }
  func.func @transform_0(%arg0: i32) -> (i32, i32) {
    %c0_i32 = arith.constant 0 : i32
    %c0_i32_0 = arith.constant 0 : i32
    return %arg0, %c0_i32 : i32, i32
  }
  func.func @transform_1(%arg0: i32) -> (i32, i32) {
    %c0_i32 = arith.constant 0 : i32
    %c0_i32_0 = arith.constant 0 : i32
    return %arg0, %c0_i32 : i32, i32
  }
  func.func @transform_2(%arg0: i32) -> (i32, i32) {
    %c0_i32 = arith.constant 0 : i32
    %c0_i32_0 = arith.constant 0 : i32
    %c0_i32_1 = arith.constant 0 : i32
    return %c0_i32, %c0_i32_0 : i32, i32
  }
}

</mosaic_0001>

<llo_original>
// kernel: tpu_custom_call.1
$region0: #{tpu_custom_call.1}
  #allocation0 [shape = 'u32[]', space=smem, size = 0x4, offset = 0x4, fixed_abs, tag = 'smem constant byte address 0x4 - core index']
  #allocation1 [shape = 'u32[144,128]{1,0:T(1,128)}', space=vmem, size = 0x12000, scoped, tag = 'internal scratch']
  %s0 = inlined_call_operand.vmem [shape: f32[24,96], index: 0, kind: input, shape index: {}]
  %s1 = inlined_call_operand.vmem [shape: s32[24,1], index: 1, kind: input, shape index: {}]
  %s2 = inlined_call_operand.hbm [shape: f32[1,1], index: 2, kind: output, shape index: {}]
  %s3 = sld [smem:[#allocation0]]
  $region49: #{tpu_custom_call.1} parent=0
    _
  %s5 = ssub.s32 1, %s3
  %s6 = scalar_select 0, %s5, %s3
  $region1: #{tpu_custom_call.1} parent=0
    #allocation2 [shape = 'u8[512]{0}', space=vmem, size = 0x400, scoped, tag = 'output window, operand 0, single buffered']
    #allocation3 [shape = 's32[2]{0}', space=sflag, size = 0x8, scoped, tag = 'scoped memory for tpu_custom_call.1']
    %7 = vsyncpa [#allocation3], 0
    loop: start=0, step=1, limit=5
    $region2: #{tpu_custom_call.1} parent=1 // loop_pre_header
      _
    $region3: #{tpu_custom_call.1} parent=1 // loop_header
      %s9 = sphi 0, %s13
      %p10 = scmp.ge.s32.totalorder %s9, 5
      %s19 = sphi 0, %s21
      %s22 = sphi 0, %s19
      %s23 = sphi 0, %s22
      %s39 = sphi 0, %s23
      %s45 = sphi 0, %s47
      %s48 = sphi 0, %s45
      %s49 = sphi 0, %s48
      %s65 = sphi 0, %s49
      %s69 = sphi 0, %s69
      %s71 = sphi 0, %s69
      %s72 = sphi 0, %s71
      %s86 = sphi 0, %s72
    $region4: #{tpu_custom_call.1} parent=1 // loop_header_branch
      %12 = sbr.rel (%p10) target = $region8
    $region5: #{tpu_custom_call.1} parent=1 // loop_body
      %s14 = ssub.s32 %s9, 1
      %s15 = ssub.s32 %s9, 2
      %s16 = sadd.s32 %s9, 1
      %s17 = ssub.s32 %s9, %s16
      %p18 = scmp.eq.s32.totalorder %s17, 0
      %s20 = sadd.s32 %s19, 1
      %s21 = scalar_select %p18, %s19, %s20
      %p24 = pneg %p18
      %p25 = scmp.eq.s32.totalorder %s9, 2
      %p26 = por %p24, %p25
      %p27 = scmp.ne.s32.totalorder %s19, %s22
      %p28 = scmp.eq.s32.totalorder %s9, 0
      %p29 = por %p27, %p28
      %p30 = scmp.ne.s32.totalorder %s19, %s22
      %p31 = scmp.eq.s32.totalorder %s14, 2
      %p32 = por %p30, %p31
      %p33 = scmp.ne.s32.totalorder %s22, %s23
      %p34 = scmp.eq.s32.totalorder %s14, 0
      %p35 = por %p33, %p34
      %p36 = scmp.ne.s32.totalorder %s22, %s23
      %p37 = scmp.eq.s32.totalorder %s15, 2
      %p38 = por %p36, %p37
      %p40 = scmp.ne.s32.totalorder %s23, %s39
      %p41 = scmp.eq.s32.totalorder %s15, 0
      %p42 = por %p40, %p41
      %s43 = ssub.s32 %s9, %s16
      %p44 = scmp.eq.s32.totalorder %s43, 0
      %s46 = sadd.s32 %s45, 1
      %s47 = scalar_select %p44, %s45, %s46
      %p50 = pneg %p44
      %p51 = scmp.eq.s32.totalorder %s9, 2
      %p52 = por %p50, %p51
      %p53 = scmp.ne.s32.totalorder %s45, %s48
      %p54 = scmp.eq.s32.totalorder %s9, 0
      %p55 = por %p53, %p54
      %p56 = scmp.ne.s32.totalorder %s45, %s48
      %p57 = scmp.eq.s32.totalorder %s14, 2
      %p58 = por %p56, %p57
      %p59 = scmp.ne.s32.totalorder %s48, %s49
      %p60 = scmp.eq.s32.totalorder %s14, 0
      %p61 = por %p59, %p60
      %p62 = scmp.ne.s32.totalorder %s48, %s49
      %p63 = scmp.eq.s32.totalorder %s15, 2
      %p64 = por %p62, %p63
      %p66 = scmp.ne.s32.totalorder %s49, %s65
      %p67 = scmp.eq.s32.totalorder %s15, 0
      %p68 = por %p66, %p67
      %s70 = sadd.s32 %s69, 1
      %p73 = scmp.eq.s32.totalorder %s9, 2
      %p74 = scmp.ne.s32.totalorder %s69, %s71
      %p75 = scmp.eq.s32.totalorder %s9, 0
      %p76 = por %p74, %p75
      %p77 = scmp.ne.s32.totalorder %s69, %s71
      %p78 = scmp.eq.s32.totalorder %s14, 2
      %p79 = por %p77, %p78
      %p80 = scmp.ne.s32.totalorder %s71, %s72
      %p81 = scmp.eq.s32.totalorder %s14, 0
      %p82 = por %p80, %p81
      %p83 = scmp.ne.s32.totalorder %s71, %s72
      %p84 = scmp.eq.s32.totalorder %s15, 2
      %p85 = por %p83, %p84
      %p87 = scmp.ne.s32.totalorder %s72, %s86
      %p88 = scmp.eq.s32.totalorder %s15, 0
      %p89 = por %p87, %p88
      %p90 = scmp.le.s32.totalorder 1, %s9
      %p91 = scmp.lt.s32.totalorder %s9, 4
      %p92 = pnand %p90, %p91
      %p93 = pneg %p92
      // Predicated region
      $region9: #{tpu_custom_call.1} parent=5 // pred_check
        _
      $region10: #{tpu_custom_call.1} parent=5 // pred_check_branch
        %95 = sbr.rel (%p92) target = $region12
      $region11: #{tpu_custom_call.1} parent=5 // pred_region
        %s96 = ssub.s32 %s9, 1
      $region12: #{tpu_custom_call.1} parent=5 // pred_fallthru
        _
      %p97 = scmp.lt.s32.totalorder %s9, 3
      // Predicated region
      $region13: #{tpu_custom_call.1} parent=5 // pred_check
        %p98 = pneg %p97
      $region14: #{tpu_custom_call.1} parent=5 // pred_check_branch
        %100 = sbr.rel (%p98) target = $region16
      $region15: #{tpu_custom_call.1} parent=5 // pred_region
        // Predicated region
        $region17: #{tpu_custom_call.1} parent=15 // pred_check
          %p101 = pneg %p29
        $region18: #{tpu_custom_call.1} parent=15 // pred_check_branch
          %103 = sbr.rel (%p101) target = $region20
        $region19: #{tpu_custom_call.1} parent=15 // pred_region
          %p104 = scmp.lt.s32.totalorder %s9, 2
          %s105 = scalar_select %p104, %s9, 2
          %s106 = smul.addr %s105, 8
          %s107 = scalar_lea.vmem %s0, %s106
        $region20: #{tpu_custom_call.1} parent=15 // pred_fallthru
          _
        // Predicated region
        $region21: #{tpu_custom_call.1} parent=15 // pred_check
          %p108 = pneg %p55
        $region22: #{tpu_custom_call.1} parent=15 // pred_check_branch
          %110 = sbr.rel (%p108) target = $region24
        $region23: #{tpu_custom_call.1} parent=15 // pred_region
          %p111 = scmp.lt.s32.totalorder %s9, 2
          %s112 = scalar_select %p111, %s9, 2
          %s113 = smul.addr %s112, 8
          %s114 = scalar_lea.vmem %s1, %s113
        $region24: #{tpu_custom_call.1} parent=15 // pred_fallthru
          _
      $region16: #{tpu_custom_call.1} parent=5 // pred_fallthru
        _
      %p115 = scmp.le.s32.totalorder 1, %s9
      %p116 = scmp.lt.s32.totalorder %s9, 4
      %p117 = pnand %p115, %p116
      %p118 = pneg %p117
      // Predicated region
      $region25: #{tpu_custom_call.1} parent=5 // pred_check
        _
      $region26: #{tpu_custom_call.1} parent=5 // pred_check_branch
        %120 = sbr.rel (%p117) target = $region28
      $region27: #{tpu_custom_call.1} parent=5 // pred_region
        %s121 = ssub.s32 %s9, 1
        %p122 = scmp.lt.s32.totalorder %s14, 2
        %s123 = scalar_select %p122, %s14, 2
        %s124 = smul.addr %s123, 8
        %s125 = scalar_lea.vmem %s0, %s124
        %p126 = pneg %p35
        %p127 = pneg %p32
        %p128 = scmp.lt.s32.totalorder %s14, 2
        %s129 = scalar_select %p128, %s14, 2
        %s130 = smul.addr %s129, 8
        %s131 = scalar_lea.vmem %s1, %s130
        %p132 = pneg %p61
        %p133 = pneg %p58
        %p134 = pneg %p82
        %p135 = pneg %p79
        %p136 = scmp.lt.s32.totalorder %s14, 2
        %s137 = scalar_select %p136, %s14, 2
        %s138 = smul.addr %s137, 8
        %s139 = scalar_lea.vmem %s0, %s138
        %p140 = scmp.lt.s32.totalorder %s14, 2
        %s141 = scalar_select %p140, %s14, 2
        %s142 = smul.addr %s141, 8
        %s143 = scalar_lea.vmem %s1, %s142
        %p144 = scmp.eq.s32.totalorder %s14, 0
        // Predicated region
        $region29: #{tpu_custom_call.1} parent=27 // pred_check
          %p145 = pneg %p144
        $region30: #{tpu_custom_call.1} parent=27 // pred_check_branch
          %147 = sbr.rel (%p145) target = $region32
        $region31: #{tpu_custom_call.1} parent=27 // pred_region
          %vm148 = vcmask 0
          %149 = vst.msk [vmem:[#allocation2] sm:$0x1] %vm148, 0.0
        $region32: #{tpu_custom_call.1} parent=27 // pred_fallthru
          _
        %v150 = vld [vmem:[%s139] sm:$0xff]
        %v151 = vld [vmem:[%s143] sm:$0xff]
        %vm152 = vcmask 785408
        %v153 = vsel %vm152, %v150, -inf
        %154 = vmax.xlane.f32.xlu0 %v153
        %v155 = vpop.xlane.xlu0 %154
        %v156 = vsub.f32 %v150, %v155
        %v157 = vmul.f32 %v156, 1.442695
        %v158 = vpow.pop %v157
        %v159 = vsel %vm152, %v158, 0.0
        %160 = vadd.xlane.f32.xlu0 %v159
        %v161 = vpop.xlane.xlu0 %160
        %v162 = vlog2.pop %v161
        %v163 = vmul.f32 %v162, 0.6931472
        %v164 = vsub.f32 %v156, %v163
        %v165 = vlaneseq
        %v166 = vand.u32 %v165, 127
        %167 = vset.pattern.permute.xlu0 0
        %168 = vperm.xlu0 %167, %v151
        %v169 = vpop.permute.xlu0 %168
        %vm170 = vcmp.eq.s32.totalorder %v166, %v169
        %v171 = vsel %vm170, 0.9010416, 0.0010416667
        %v172 = vmul.f32 %v171, %v164
        %v173 = vsel %vm152, %v172, 0.0
        %174 = vadd.xlane.f32.xlu0 %v173
        %v175 = vpop.xlane.xlu0 %174
        %v176 = vsub.f32 0.0, %v175
        %s177 = smul.u32 %s14, 8
        %v178 = vlaneseq
        %v179 = vshrl.u32 %v178, 7
        %v180 = vstv %s177
        %v181 = vadd.s32 %v180, %v179
        %vm182 = vcmp.lt.s32.totalorder %v181, 20
        %v183 = vsel %vm182, %v176, 0.0
        %v184 = vld [vmem:[#allocation2] sm:$0x1]
        %v185 = vrot.slane %v183, 4
        %v186 = vadd.f32 %v183, %v185
        %v187 = vrot.slane %v186, 2
        %v188 = vadd.f32 %v186, %v187
        %v189 = vrot.slane %v188, 1
        %v190 = vadd.f32 %v188, %v189
        %v191 = vadd.f32 %v184, %v190
        %vm192 = vcmask 0
        %193 = vst.msk [vmem:[#allocation2] sm:$0x1] %vm192, %v191
        %p194 = scmp.eq.s32.totalorder %s14, 2
        // Predicated region
        $region33: #{tpu_custom_call.1} parent=27 // pred_check
          %p195 = pneg %p194
        $region34: #{tpu_custom_call.1} parent=27 // pred_check_branch
          %197 = sbr.rel (%p195) target = $region36
        $region35: #{tpu_custom_call.1} parent=27 // pred_region
          %v198 = vld [vmem:[#allocation2] sm:$0x1]
          %v199 = vmul.f32 %v198, 0.05
          %200 = vst.msk [vmem:[#allocation2] sm:$0x1] %vm192, %v199
        $region36: #{tpu_custom_call.1} parent=27 // pred_fallthru
          _
        // Predicated region
        $region37: #{tpu_custom_call.1} parent=27 // pred_check
          %p201 = pneg %p79
        $region38: #{tpu_custom_call.1} parent=27 // pred_check_branch
          %203 = sbr.rel (%p201) target = $region40
        $region39: #{tpu_custom_call.1} parent=27 // pred_region
          %s205 = ssub.s32 16, 16
          %206 = vsyncadd [#allocation3], %s205
          %s208 = sshll.u32 [#allocation2], 4
          %s209 = int_to_ptr.vmem [resolvable:$true] %s208
          %211 = dma.vmem_to_hbm [thread:$0]  %s209, 16, %s2, [#allocation3]
        $region40: #{tpu_custom_call.1} parent=27 // pred_fallthru
          _
        // Predicated region
        $region41: #{tpu_custom_call.1} parent=27 // pred_check
          %p212 = pneg %p79
        $region42: #{tpu_custom_call.1} parent=27 // pred_check_branch
          %214 = sbr.rel (%p212) target = $region44
        $region43: #{tpu_custom_call.1} parent=27 // pred_region
          %215 = dma.done [#allocation3], 16
        $region44: #{tpu_custom_call.1} parent=27 // pred_fallthru
          _
      $region28: #{tpu_custom_call.1} parent=5 // pred_fallthru
        _
      %p216 = scmp.le.s32.totalorder 2, %s9
      // Predicated region
      $region45: #{tpu_custom_call.1} parent=5 // pred_check
        %p217 = pneg %p216
      $region46: #{tpu_custom_call.1} parent=5 // pred_check_branch
        %219 = sbr.rel (%p217) target = $region48
      $region47: #{tpu_custom_call.1} parent=5 // pred_region
        %s220 = ssub.s32 %s9, 2
      $region48: #{tpu_custom_call.1} parent=5 // pred_fallthru
        _
    $region6: #{tpu_custom_call.1} parent=1 // loop_footer
      %s13 = sadd.s32 1, %s9
    $region7: #{tpu_custom_call.1} parent=1 // loop_footer_branch
      %8 = sbr.rel target = $region3
    $region8: #{tpu_custom_call.1} parent=1 // loop_exit
      _
    %221 = vsyncpa [#allocation3], 1
    %s222 = scalar_lea.sflag [#allocation3], 1
    %223 = vsyncpa %s222, 1

</llo_original>
